<compile_context>
chip_gen: v7x
topology: tpu7x:2x2x1
jax: 0.10.0
libtpu: 0.0.40
codegen_flags: <defaults>
</compile_context>

<pallas_src>
import functools

import jax
import jax.numpy as jnp
from jax.experimental import pallas as pl
from jax.experimental.pallas import tpu as pltpu

_MIB = 1024 * 1024


def _vmem_budget_bytes() -> int:
    """Per-generation scoped-VMEM ceiling to request / size buffers against."""
    try:
        cap = int(pltpu.get_tpu_info().vmem_capacity_bytes)
    except Exception:
        cap = 64 * _MIB  # conservative: v7x physical per-core VMEM
    limit = min(cap - 8 * _MIB, (cap * 3) // 4)  # v5e/v6e ~96 MiB, v7x ~48 MiB
    return max(limit, 16 * _MIB)


def _largest_divisor_leq(n: int, cap: int) -> int:
    cap = max(1, min(n, cap))
    for d in range(cap, 0, -1):
        if n % d == 0:
            return d
    return 1


def _pick_l_tile(c: int, l: int, itemsize: int, budget: int) -> int:
    """Byte-targeted, lane-dense L tile: multiple of 128 lanes, or full L."""
    target = min(6 * _MIB, max(1 * _MIB, (budget - 2 * _MIB) // 6))
    row_bytes = max(1, c * itemsize)
    tl = ((target // row_bytes) // 128) * 128
    tl = max(128, tl)
    return l if tl >= l else tl


# --------------------------- fused single-pass ------------------------------


def _se_fused_kernel(x_ref, w1_ref, w2_ref, o_ref):
    # x_ref/o_ref: (TN, C, L); w1_ref: (H, C); w2_ref: (C, H).
    w1 = w1_ref[...].astype(jnp.float32)
    w2 = w2_ref[...].astype(jnp.float32)
    for b in range(x_ref.shape[0]):  # TN is small & static -> unrolled
        xb = x_ref[b]                                                   # (C, L)
        mean = jnp.mean(xb.astype(jnp.float32), axis=-1, keepdims=True)  # (C, 1)
        hidden = jnp.maximum(
            jnp.dot(w1, mean, preferred_element_type=jnp.float32), 0.0)  # (H, 1)
        gate = jax.nn.sigmoid(
            jnp.dot(w2, hidden, preferred_element_type=jnp.float32))     # (C, 1)
        o_ref[b] = (xb * gate.astype(xb.dtype)).astype(o_ref.dtype)


# --------------------------- two-pass fallback -------------------------------


def _se_pool_fc_kernel(x_ref, w1_ref, w2_ref, se_ref, acc_ref, *, l_total, l_tile):
    # x_ref: (1, C, TL); w1_ref: (H, C); w2_ref: (C, H); se_ref: (1, C, 1)
    # acc_ref: (C, 1) f32 running sum over L.
    li = pl.program_id(1)
    last = pl.num_programs(1) - 1

    @pl.when(li == 0)
    def _():
        acc_ref[...] = jnp.zeros_like(acc_ref)

    xblk = x_ref[0].astype(jnp.float32)                                  # (C, TL)
    rem = l_total % l_tile
    if rem == 0:
        # All tiles are full: unmasked steady-state accumulation.
        acc_ref[...] += jnp.sum(xblk, axis=-1, keepdims=True)
    else:
        @pl.when(li != last)
        def _():
            acc_ref[...] += jnp.sum(xblk, axis=-1, keepdims=True)

        @pl.when(li == last)
        def _():
            lane = jax.lax.broadcasted_iota(jnp.int32, xblk.shape, 1)
            acc_ref[...] += jnp.sum(jnp.where(lane < rem, xblk, 0.0),
                                    axis=-1, keepdims=True)

    @pl.when(li == last)
    def _():
        mean = acc_ref[...] * (1.0 / l_total)                            # (C, 1)
        hidden = jnp.maximum(
            jnp.dot(w1_ref[...].astype(jnp.float32), mean,
                    preferred_element_type=jnp.float32), 0.0)            # (H, 1)
        gate = jax.nn.sigmoid(
            jnp.dot(w2_ref[...].astype(jnp.float32), hidden,
                    preferred_element_type=jnp.float32))                 # (C, 1)
        se_ref[...] = gate[None].astype(se_ref.dtype)                    # (1, C, 1)


def _se_scale_kernel(x_ref, se_ref, o_ref):
    # x_ref: (1, C, TL), se_ref: (1, C, 1); lane-broadcast multiply in x dtype.
    o_ref[...] = (x_ref[...] * se_ref[...].astype(x_ref.dtype)).astype(o_ref.dtype)


# ------------------------------- wrapper -------------------------------------


def se_block(x: jax.Array, w1: jax.Array, w2: jax.Array, *,
             force_two_pass: bool = False) -> jax.Array:
    """SEblock forward: x (N, C, L), w1 (H, C), w2 (C, H) -> (N, C, L)."""
    assert x.ndim == 3, "expected (N, C, L)"
    n, c, l = x.shape
    h, c1 = w1.shape
    assert c1 == c and w2.shape == (c, h) and h >= 1

    itemsize = jnp.dtype(x.dtype).itemsize
    budget = _vmem_budget_bytes()
    w_bytes = 2 * (w1.size * jnp.dtype(w1.dtype).itemsize
                   + w2.size * jnp.dtype(w2.dtype).itemsize)
    margin = 2 * _MIB

    slab = c * l * itemsize  # one batch element (input OR output)
    fused_ok = (not force_two_pass) and (4 * slab + w_bytes + margin <= budget)

    if fused_ok:
        max_tn = (budget - w_bytes - margin) // max(1, 4 * slab)
        tn = _largest_divisor_leq(n, min(8, int(max_tn)))
        return pl.pallas_call(
            _se_fused_kernel,
            out_shape=jax.ShapeDtypeStruct((n, c, l), x.dtype),
            grid_spec=pltpu.PrefetchScalarGridSpec(
                num_scalar_prefetch=0,
                grid=(n // tn,),
                in_specs=[
                    pl.BlockSpec((tn, c, l), lambda i: (i, 0, 0)),
                    pl.BlockSpec((h, c), lambda i: (0, 0)),
                    pl.BlockSpec((c, h), lambda i: (0, 0)),
                ],
                out_specs=pl.BlockSpec((tn, c, l), lambda i: (i, 0, 0)),
            ),
            compiler_params=pltpu.CompilerParams(
                dimension_semantics=("parallel",),
                vmem_limit_bytes=budget),
            cost_estimate=pl.CostEstimate(
                flops=2 * n * c * l + 4 * n * c * h,
                transcendentals=n * c,
                bytes_accessed=2 * n * c * l * itemsize + w_bytes // 2),
        )(x, w1, w2)

    # ---- two-pass fallback (per-batch (C, L) slab too large for VMEM) ----
    l_tile = _pick_l_tile(c, l, itemsize, budget)
    num_l = pl.cdiv(l, l_tile)

    se = pl.pallas_call(
        functools.partial(_se_pool_fc_kernel, l_total=l, l_tile=l_tile),
        out_shape=jax.ShapeDtypeStruct((n, c, 1), jnp.float32),
        grid_spec=pltpu.PrefetchScalarGridSpec(
            num_scalar_prefetch=0,
            grid=(n, num_l),
            in_specs=[
                pl.BlockSpec((1, c, l_tile), lambda i, li: (i, 0, li)),
                pl.BlockSpec((h, c), lambda i, li: (0, 0)),
                pl.BlockSpec((c, h), lambda i, li: (0, 0)),
            ],
            out_specs=pl.BlockSpec((1, c, 1), lambda i, li: (i, 0, 0)),
            scratch_shapes=[pltpu.VMEM((c, 1), jnp.float32)],
        ),
        compiler_params=pltpu.CompilerParams(
            dimension_semantics=("parallel", "arbitrary"),
            vmem_limit_bytes=budget),
        cost_estimate=pl.CostEstimate(
            flops=n * c * l + 4 * n * c * h,
            transcendentals=n * c,
            bytes_accessed=n * c * l * itemsize + w_bytes // 2 + n * c * 4),
    )(x, w1, w2)

    out = pl.pallas_call(
        _se_scale_kernel,
        out_shape=jax.ShapeDtypeStruct((n, c, l), x.dtype),
        grid_spec=pltpu.PrefetchScalarGridSpec(
            num_scalar_prefetch=0,
            grid=(n, num_l),
            in_specs=[
                pl.BlockSpec((1, c, l_tile), lambda i, li: (i, 0, li)),
                pl.BlockSpec((1, c, 1), lambda i, li: (i, 0, 0)),
            ],
            out_specs=pl.BlockSpec((1, c, l_tile), lambda i, li: (i, 0, li)),
        ),
        compiler_params=pltpu.CompilerParams(
            dimension_semantics=("parallel", "parallel"),
            vmem_limit_bytes=budget),
        cost_estimate=pl.CostEstimate(
            flops=n * c * l,
            transcendentals=0,
            bytes_accessed=2 * n * c * l * itemsize + n * c * 4),
    )(x, se)
    return out


if __name__ == "__main__":
    # Small shapes consistent with the module; channels must be >= reduction
    # ratio so the bottleneck FC has >= 1 unit (PyTorch default ratio is 16).
    key = jax.random.PRNGKey(0)
    N, C, L = 2, 64, 16
    reduction_ratio = 16
    H = C // reduction_ratio  # 4

    kx, k1, k2 = jax.random.split(key, 3)
    x = jax.random.normal(kx, (N, C, L), dtype=jnp.float32)
    w1 = 0.1 * jax.random.normal(k1, (H, C), dtype=jnp.float32)  # Linear(C -> H), no bias
    w2 = 0.1 * jax.random.normal(k2, (C, H), dtype=jnp.float32)  # Linear(H -> C), no bias

    # Pure-JAX reference (same math as the PyTorch module).
    pooled = jnp.mean(x, axis=-1)                      # (N, C)
    hidden = jnp.maximum(pooled @ w1.T, 0.0)           # (N, H)
    gate = jax.nn.sigmoid(hidden @ w2.T)               # (N, C)
    ref = x * gate[:, :, None]

    # Default (fused single-pass) path.
    y = jax.block_until_ready(se_block(x, w1, w2))
    assert y.shape == ref.shape, (y.shape, ref.shape)
    assert y.dtype == x.dtype
    assert jnp.allclose(y, ref, rtol=1e-5, atol=1e-5), float(jnp.max(jnp.abs(y - ref)))

    # Also exercise the two-pass fallback used for very large C*L slabs.
    y2 = jax.block_until_ready(se_block(x, w1, w2, force_two_pass=True))
    assert jnp.allclose(y2, ref, rtol=1e-5, atol=1e-5), float(jnp.max(jnp.abs(y2 - ref)))

    print("KERNEL_OK")
</pallas_src>

<mosaic_0001>
module attributes {stable_mosaic.version = 11 : i64} {
  func.func @_se_fused_kernel(%arg0: i32, %arg1: memref<2x64x16xf32, #tpu.memory_space<vmem>>, %arg2: memref<4x64xf32, #tpu.memory_space<vmem>>, %arg3: memref<64x4xf32, #tpu.memory_space<vmem>>, %arg4: memref<2x64x16xf32, #tpu.memory_space<vmem>>) attributes {dimension_semantics = [#tpu.dimension_semantics<parallel>], iteration_bounds = array<i64: 1>, scalar_prefetch = 0 : i64, scratch_operands = 0 : i64, tpu.core_type = #tpu.core_type<tc>, window_params = [{transform_indices = @transform_0, window_bounds = array<i64: 2, 64, 16>}, {pipeline_mode = #tpu.pipeline_mode<synchronous>, transform_indices = @transform_1, window_bounds = array<i64: 4, 64>}, {pipeline_mode = #tpu.pipeline_mode<synchronous>, transform_indices = @transform_2, window_bounds = array<i64: 64, 4>}, {transform_indices = @transform_3, window_bounds = array<i64: 2, 64, 16>}]} {
    %c0 = arith.constant 0 : index
    %c0_0 = arith.constant 0 : index
    %0 = vector.load %arg2[%c0, %c0_0] : memref<4x64xf32, #tpu.memory_space<vmem>>, vector<4x64xf32>
    %c0_1 = arith.constant 0 : index
    %c0_2 = arith.constant 0 : index
    %1 = vector.load %arg3[%c0_1, %c0_2] : memref<64x4xf32, #tpu.memory_space<vmem>>, vector<64x4xf32>
    %c0_3 = arith.constant 0 : index
    %c0_4 = arith.constant 0 : index
    %c0_5 = arith.constant 0 : index
    %2 = vector.load %arg1[%c0_3, %c0_4, %c0_5] : memref<2x64x16xf32, #tpu.memory_space<vmem>>, vector<1x64x16xf32>
    %3 = vector.shape_cast %2 : vector<1x64x16xf32> to vector<64x16xf32>
    %cst = arith.constant dense<0.000000e+00> : vector<64xf32>
    %4 = vector.multi_reduction <add>, %3, %cst [1] : vector<64x16xf32> to vector<64xf32>
    %5 = vector.shape_cast %4 : vector<64xf32> to vector<64x1xf32>
    %cst_6 = arith.constant 1.600000e+01 : f32
    %6 = vector.broadcast %cst_6 : f32 to vector<64x1xf32>
    %7 = arith.divf %5, %6 : vector<64x1xf32>
    %cst_7 = arith.constant dense<0.000000e+00> : vector<4x1xf32>
    %8 = tpu.matmul %0, %7, %cst_7 {dimension_numbers = #tpu.dot_dimension_numbers<[1], [0], [0], [1], [0, 0, 1, 1], [], []>} : vector<4x64xf32>, vector<64x1xf32>, vector<4x1xf32> -> vector<4x1xf32>
    %cst_8 = arith.constant 0.000000e+00 : f32
    %9 = vector.broadcast %cst_8 : f32 to vector<4x1xf32>
    %10 = arith.maximumf %8, %9 : vector<4x1xf32>
    %cst_9 = arith.constant dense<0.000000e+00> : vector<64x1xf32>
    %11 = tpu.matmul %1, %10, %cst_9 {dimension_numbers = #tpu.dot_dimension_numbers<[1], [0], [0], [1], [0, 0, 1, 1], [], []>} : vector<64x4xf32>, vector<4x1xf32>, vector<64x1xf32> -> vector<64x1xf32>
    %12 = arith.negf %11 : vector<64x1xf32>
    %13 = math.exp %12 : vector<64x1xf32>
    %cst_10 = arith.constant 1.000000e+00 : f32
    %14 = vector.broadcast %cst_10 : f32 to vector<64x1xf32>
    %15 = arith.addf %14, %13 : vector<64x1xf32>
    %16 = arith.divf %14, %15 : vector<64x1xf32>
    %17 = vector.broadcast %16 : vector<64x1xf32> to vector<64x16xf32>
    %18 = arith.mulf %3, %17 : vector<64x16xf32>
    %c0_11 = arith.constant 0 : index
    %c0_12 = arith.constant 0 : index
    %c0_13 = arith.constant 0 : index
    %19 = vector.load %arg4[%c0_11, %c0_12, %c0_13] : memref<2x64x16xf32, #tpu.memory_space<vmem>>, vector<1x64x16xf32>
    %20 = vector.shape_cast %19 : vector<1x64x16xf32> to vector<64x16xf32>
    %21 = vector.shape_cast %18 : vector<64x16xf32> to vector<1x64x16xf32>
    tpu.vector_store %arg4[%c0_11, %c0_12, %c0_13], %21 {strides = array<i32>} : memref<2x64x16xf32, #tpu.memory_space<vmem>>, vector<1x64x16xf32>,
    %c1 = arith.constant 1 : index
    %c0_14 = arith.constant 0 : index
    %c0_15 = arith.constant 0 : index
    %22 = vector.load %arg1[%c1, %c0_14, %c0_15] : memref<2x64x16xf32, #tpu.memory_space<vmem>>, vector<1x64x16xf32>
    %23 = vector.shape_cast %22 : vector<1x64x16xf32> to vector<64x16xf32>
    %cst_16 = arith.constant dense<0.000000e+00> : vector<64xf32>
    %24 = vector.multi_reduction <add>, %23, %cst_16 [1] : vector<64x16xf32> to vector<64xf32>
    %25 = vector.shape_cast %24 : vector<64xf32> to vector<64x1xf32>
    %cst_17 = arith.constant 1.600000e+01 : f32
    %26 = vector.broadcast %cst_17 : f32 to vector<64x1xf32>
    %27 = arith.divf %25, %26 : vector<64x1xf32>
    %cst_18 = arith.constant dense<0.000000e+00> : vector<4x1xf32>
    %28 = tpu.matmul %0, %27, %cst_18 {dimension_numbers = #tpu.dot_dimension_numbers<[1], [0], [0], [1], [0, 0, 1, 1], [], []>} : vector<4x64xf32>, vector<64x1xf32>, vector<4x1xf32> -> vector<4x1xf32>
    %cst_19 = arith.constant 0.000000e+00 : f32
    %29 = vector.broadcast %cst_19 : f32 to vector<4x1xf32>
    %30 = arith.maximumf %28, %29 : vector<4x1xf32>
    %cst_20 = arith.constant dense<0.000000e+00> : vector<64x1xf32>
    %31 = tpu.matmul %1, %30, %cst_20 {dimension_numbers = #tpu.dot_dimension_numbers<[1], [0], [0], [1], [0, 0, 1, 1], [], []>} : vector<64x4xf32>, vector<4x1xf32>, vector<64x1xf32> -> vector<64x1xf32>
    %32 = arith.negf %31 : vector<64x1xf32>
    %33 = math.exp %32 : vector<64x1xf32>
    %cst_21 = arith.constant 1.000000e+00 : f32
    %34 = vector.broadcast %cst_21 : f32 to vector<64x1xf32>
    %35 = arith.addf %34, %33 : vector<64x1xf32>
    %36 = arith.divf %34, %35 : vector<64x1xf32>
    %37 = vector.broadcast %36 : vector<64x1xf32> to vector<64x16xf32>
    %38 = arith.mulf %23, %37 : vector<64x16xf32>
    %c1_22 = arith.constant 1 : index
    %c0_23 = arith.constant 0 : index
    %c0_24 = arith.constant 0 : index
    %39 = vector.load %arg4[%c1_22, %c0_23, %c0_24] : memref<2x64x16xf32, #tpu.memory_space<vmem>>, vector<1x64x16xf32>
    %40 = vector.shape_cast %39 : vector<1x64x16xf32> to vector<64x16xf32>
    %41 = vector.shape_cast %38 : vector<64x16xf32> to vector<1x64x16xf32>
    tpu.vector_store %arg4[%c1_22, %c0_23, %c0_24], %41 {strides = array<i32>} : memref<2x64x16xf32, #tpu.memory_space<vmem>>, vector<1x64x16xf32>,
    return
  }
  func.func @transform_0(%arg0: i32) -> (i32, i32, i32) {
    %c0_i32 = arith.constant 0 : i32
    %c0_i32_0 = arith.constant 0 : i32
    %c0_i32_1 = arith.constant 0 : i32
    return %arg0, %c0_i32, %c0_i32_0 : i32, i32, i32
  }
  func.func @transform_1(%arg0: i32) -> (i32, i32) {
    %c0_i32 = arith.constant 0 : i32
    %c0_i32_0 = arith.constant 0 : i32
    %c0_i32_1 = arith.constant 0 : i32
    return %c0_i32, %c0_i32_0 : i32, i32
  }
  func.func @transform_2(%arg0: i32) -> (i32, i32) {
    %c0_i32 = arith.constant 0 : i32
    %c0_i32_0 = arith.constant 0 : i32
    %c0_i32_1 = arith.constant 0 : i32
    return %c0_i32, %c0_i32_0 : i32, i32
  }
  func.func @transform_3(%arg0: i32) -> (i32, i32, i32) {
    %c0_i32 = arith.constant 0 : i32
    %c0_i32_0 = arith.constant 0 : i32
    %c0_i32_1 = arith.constant 0 : i32
    return %arg0, %c0_i32, %c0_i32_0 : i32, i32, i32
  }
}

</mosaic_0001>

<llo_original>
// kernel: tpu_custom_call.1
$region0: #{tpu_custom_call.1}
  #allocation0 [shape = 'u32[]', space=smem, size = 0x4, offset = 0x4, fixed_abs, tag = 'smem constant byte address 0x4 - core index']
  #allocation1 [shape = 'u32[144,128]{1,0:T(1,128)}', space=vmem, size = 0x12000, scoped, tag = 'internal scratch']
  %s0 = inlined_call_operand.vmem [shape: f32[2,64,16], index: 0, kind: input, shape index: {}]
  %s1 = inlined_call_operand.vmem [shape: f32[4,64], index: 1, kind: input, shape index: {}]
  %s2 = inlined_call_operand.vmem [shape: f32[64,4], index: 2, kind: input, shape index: {}]
  %s3 = inlined_call_operand.vmem [shape: f32[2,64,16], index: 3, kind: output, shape index: {}]
  %s4 = sld [smem:[#allocation0]]
  $region22: #{tpu_custom_call.1} parent=0
    _
  %s6 = ssub.s32 1, %s4
  %s7 = scalar_select 0, %s6, %s4
  // Predicated region
  $region2: #{tpu_custom_call.1} parent=0 // pred_check
    _
  $region3: #{tpu_custom_call.1} parent=0 // pred_check_branch
    %9 = sbr.rel (0) target = $region5
  $region4: #{tpu_custom_call.1} parent=0 // pred_region
    _
  $region5: #{tpu_custom_call.1} parent=0 // pred_fallthru
    _
  // Predicated region
  $region6: #{tpu_custom_call.1} parent=0 // pred_check
    _
  $region7: #{tpu_custom_call.1} parent=0 // pred_check_branch
    %11 = sbr.rel (0) target = $region9
  $region8: #{tpu_custom_call.1} parent=0 // pred_region
    _
  $region9: #{tpu_custom_call.1} parent=0 // pred_fallthru
    _
  // Predicated region
  $region10: #{tpu_custom_call.1} parent=0 // pred_check
    _
  $region11: #{tpu_custom_call.1} parent=0 // pred_check_branch
    %13 = sbr.rel (0) target = $region13
  $region12: #{tpu_custom_call.1} parent=0 // pred_region
    _
  $region13: #{tpu_custom_call.1} parent=0 // pred_fallthru
    _
  %v14 = vld [vmem:[%s1] sm:$0xf]
  %v15 = vld [vmem:[%s2] sm:$0xff]
  %v16 = vld [vmem:[%s2 + $0x8] sm:$0xff]
  %v17 = vld [vmem:[%s2 + $0x10] sm:$0xff]
  %v18 = vld [vmem:[%s2 + $0x18] sm:$0xff]
  %v19 = vld [vmem:[%s2 + $0x20] sm:$0xff]
  %v20 = vld [vmem:[%s2 + $0x28] sm:$0xff]
  %v21 = vld [vmem:[%s2 + $0x30] sm:$0xff]
  %v22 = vld [vmem:[%s2 + $0x38] sm:$0xff]
  %v23 = vld [vmem:[%s0] sm:$0xff]
  %v24 = vld [vmem:[%s0 + $0x8] sm:$0xff]
  %v25 = vld [vmem:[%s0 + $0x10] sm:$0xff]
  %v26 = vld [vmem:[%s0 + $0x18] sm:$0xff]
  %v27 = vld [vmem:[%s0 + $0x20] sm:$0xff]
  %v28 = vld [vmem:[%s0 + $0x28] sm:$0xff]
  %v29 = vld [vmem:[%s0 + $0x30] sm:$0xff]
  %v30 = vld [vmem:[%s0 + $0x38] sm:$0xff]
  %vm31 = vcmask 130048
  %v32 = vsel %vm31, %v23, 0.0
  %33 = vadd.xlane.f32.xlu0 %v32
  %v34 = vpop.xlane.xlu0 %33
  %v35 = vsel %vm31, %v24, 0.0
  %36 = vadd.xlane.f32.xlu0 %v35
  %v37 = vpop.xlane.xlu0 %36
  %v38 = vsel %vm31, %v25, 0.0
  %39 = vadd.xlane.f32.xlu0 %v38
  %v40 = vpop.xlane.xlu0 %39
  %v41 = vsel %vm31, %v26, 0.0
  %42 = vadd.xlane.f32.xlu0 %v41
  %v43 = vpop.xlane.xlu0 %42
  %v44 = vsel %vm31, %v27, 0.0
  %45 = vadd.xlane.f32.xlu0 %v44
  %v46 = vpop.xlane.xlu0 %45
  %v47 = vsel %vm31, %v28, 0.0
  %48 = vadd.xlane.f32.xlu0 %v47
  %v49 = vpop.xlane.xlu0 %48
  %v50 = vsel %vm31, %v29, 0.0
  %51 = vadd.xlane.f32.xlu0 %v50
  %v52 = vpop.xlane.xlu0 %51
  %v53 = vsel %vm31, %v30, 0.0
  %54 = vadd.xlane.f32.xlu0 %v53
  %v55 = vpop.xlane.xlu0 %54
  %v56 = vrcp.pop 16.0
  %v57 = vmul.f32 %v34, %v56
  %v58 = vmul.f32 %v37, %v56
  %v59 = vmul.f32 %v40, %v56
  %v60 = vmul.f32 %v43, %v56
  %v61 = vmul.f32 %v46, %v56
  %v62 = vmul.f32 %v49, %v56
  %v63 = vmul.f32 %v52, %v56
  %v64 = vmul.f32 %v55, %v56
  %vm65 = vcmask 523264
  %v67 = vsel %vm65, %v14, 0
  %69 = vmatprep.subr.mxu0 0.0
  %70 = vmatpush1.msra.mxu0 %v57
  %71 = vmatprep.subr.mxu0 0.0
  %72 = vmatpush1.msra.mxu0 %v58
  %73 = vmatprep.subr.mxu0 0.0
  %74 = vmatpush1.msra.mxu0 %v59
  %75 = vmatprep.subr.mxu0 0.0
  %76 = vmatpush1.msra.mxu0 %v60
  %77 = vmatprep.subr.mxu0 0.0
  %78 = vmatpush1.msra.mxu0 %v61
  %79 = vmatprep.subr.mxu0 0.0
  %80 = vmatpush1.msra.mxu0 %v62
  %81 = vmatprep.subr.mxu0 0.0
  %82 = vmatpush1.msra.mxu0 %v63
  %83 = vmatprep.subr.mxu0 0.0
  %84 = vmatpush1.msra.mxu0 %v64
  %85 = vmatprep.subr.mxu0 0.0
  %86 = vmatpush1.msra.mxu0 0.0
  %87 = vmatprep.subr.mxu0 0.0
  %88 = vmatpush1.msra.mxu0 0.0
  %89 = vmatprep.subr.mxu0 0.0
  %90 = vmatpush1.msra.mxu0 0.0
  %91 = vmatprep.subr.mxu0 0.0
  %92 = vmatpush1.msra.mxu0 0.0
  %93 = vmatprep.subr.mxu0 0.0
  %94 = vmatpush1.msra.mxu0 0.0
  %95 = vmatprep.subr.mxu0 0.0
  %96 = vmatpush1.msra.mxu0 0.0
  %97 = vmatprep.subr.mxu0 0.0
  %98 = vmatpush1.msra.mxu0 0.0
  %99 = vmatprep.subr.mxu0 0.0
  %100 = vmatpush1.msra.mxu0 0.0
  %101 = vmatprep.subr.mxu0 0.0
  %102 = vmatpush1.msra.mxu0 0.0
  %103 = vmatprep.subr.mxu0 0.0
  %104 = vmatpush1.msra.mxu0 0.0
  %105 = vmatprep.subr.mxu0 0.0
  %106 = vmatpush1.msra.mxu0 0.0
  %107 = vmatprep.subr.mxu0 0.0
  %108 = vmatpush1.msra.mxu0 0.0
  %109 = vmatprep.subr.mxu0 0.0
  %110 = vmatpush1.msra.mxu0 0.0
  %111 = vmatprep.subr.mxu0 0.0
  %112 = vmatpush1.msra.mxu0 0.0
  %113 = vmatprep.subr.mxu0 0.0
  %114 = vmatpush1.msra.mxu0 0.0
  %115 = vmatprep.subr.mxu0 0.0
  %116 = vmatpush1.msra.mxu0 0.0
  %117 = vmatprep.subr.mxu0 0.0
  %118 = vmatpush1.msra.mxu0 0.0
  %119 = vmatprep.subr.mxu0 0.0
  %120 = vmatpush1.msra.mxu0 0.0
  %121 = vmatprep.subr.mxu0 0.0
  %122 = vmatpush1.msra.mxu0 0.0
  %123 = vmatprep.subr.mxu0 0.0
  %124 = vmatpush1.msra.mxu0 0.0
  %125 = vmatprep.subr.mxu0 0.0
  %126 = vmatpush1.msra.mxu0 0.0
  %127 = vmatprep.subr.mxu0 0.0
  %128 = vmatpush1.msra.mxu0 0.0
  %129 = vmatprep.subr.mxu0 0.0
  %130 = vmatpush1.msra.mxu0 0.0
  %131 = vmatprep.subr.mxu0 0.0
  %132 = vmatpush1.msra.mxu0 0.0
  %133 = vmatprep.mubr.f32.mxu0 0.0
  %134 = vmatmul.mubr.f32.gmra.mrb[0].mxu0 %v67
  %v135 = vpop.f32.mrb[0].mxu0
  %v136 = vadd.f32 0.0, %v135
  %v137 = vpop.f32.mrb[0].mxu0
  %138 = vdwg.mxu0
  %v139 = vmax.f32 %v136, 0.0
  %vm140 = vcmask 31744
  %v142 = vsel %vm140, %v15, 0
  %v145 = vsel %vm140, %v16, 0
  %v148 = vsel %vm140, %v17, 0
  %v151 = vsel %vm140, %v18, 0
  %v154 = vsel %vm140, %v19, 0
  %v157 = vsel %vm140, %v20, 0
  %v160 = vsel %vm140, %v21, 0
  %v163 = vsel %vm140, %v22, 0
  %vm165 = vcmask 1043456
  %v167 = vsel %vm165, %v139, 0
  %169 = vmatprep.subr.mxu0 0.0
  %170 = vmatpush1.msra.mxu0 %v167
  %171 = vmatprep.subr.mxu0 0.0
  %172 = vmatpush1.msra.mxu0 0.0
  %173 = vmatprep.subr.mxu0 0.0
  %174 = vmatpush1.msra.mxu0 0.0
  %175 = vmatprep.subr.mxu0 0.0
  %176 = vmatpush1.msra.mxu0 0.0
  %177 = vmatprep.subr.mxu0 0.0
  %178 = vmatpush1.msra.mxu0 0.0
  %179 = vmatprep.subr.mxu0 0.0
  %180 = vmatpush1.msra.mxu0 0.0
  %181 = vmatprep.subr.mxu0 0.0
  %182 = vmatpush1.msra.mxu0 0.0
  %183 = vmatprep.subr.mxu0 0.0
  %184 = vmatpush1.msra.mxu0 0.0
  %185 = vmatprep.subr.mxu0 0.0
  %186 = vmatpush1.msra.mxu0 0.0
  %187 = vmatprep.subr.mxu0 0.0
  %188 = vmatpush1.msra.mxu0 0.0
  %189 = vmatprep.subr.mxu0 0.0
  %190 = vmatpush1.msra.mxu0 0.0
  %191 = vmatprep.subr.mxu0 0.0
  %192 = vmatpush1.msra.mxu0 0.0
  %193 = vmatprep.subr.mxu0 0.0
  %194 = vmatpush1.msra.mxu0 0.0
  %195 = vmatprep.subr.mxu0 0.0
  %196 = vmatpush1.msra.mxu0 0.0
  %197 = vmatprep.subr.mxu0 0.0
  %198 = vmatpush1.msra.mxu0 0.0
  %199 = vmatprep.subr.mxu0 0.0
  %200 = vmatpush1.msra.mxu0 0.0
  %201 = vmatprep.subr.mxu0 0.0
  %202 = vmatpush1.msra.mxu0 0.0
  %203 = vmatprep.subr.mxu0 0.0
  %204 = vmatpush1.msra.mxu0 0.0
  %205 = vmatprep.subr.mxu0 0.0
  %206 = vmatpush1.msra.mxu0 0.0
  %207 = vmatprep.subr.mxu0 0.0
  %208 = vmatpush1.msra.mxu0 0.0
  %209 = vmatprep.subr.mxu0 0.0
  %210 = vmatpush1.msra.mxu0 0.0
  %211 = vmatprep.subr.mxu0 0.0
  %212 = vmatpush1.msra.mxu0 0.0
  %213 = vmatprep.subr.mxu0 0.0
  %214 = vmatpush1.msra.mxu0 0.0
  %215 = vmatprep.subr.mxu0 0.0
  %216 = vmatpush1.msra.mxu0 0.0
  %217 = vmatprep.subr.mxu0 0.0
  %218 = vmatpush1.msra.mxu0 0.0
  %219 = vmatprep.subr.mxu0 0.0
  %220 = vmatpush1.msra.mxu0 0.0
  %221 = vmatprep.subr.mxu0 0.0
  %222 = vmatpush1.msra.mxu0 0.0
  %223 = vmatprep.subr.mxu0 0.0
  %224 = vmatpush1.msra.mxu0 0.0
  %225 = vmatprep.subr.mxu0 0.0
  %226 = vmatpush1.msra.mxu0 0.0
  %227 = vmatprep.subr.mxu0 0.0
  %228 = vmatpush1.msra.mxu0 0.0
  %229 = vmatprep.subr.mxu0 0.0
  %230 = vmatpush1.msra.mxu0 0.0
  %231 = vmatprep.subr.mxu0 0.0
  %232 = vmatpush1.msra.mxu0 0.0
  %233 = vmatprep.mubr.f32.mxu0 0.0
  %234 = vmatmul.mubr.f32.gmra.mrb[0].mxu0 %v142
  %v235 = vpop.f32.mrb[0].mxu0
  %v236 = vadd.f32 0.0, %v235
  %v237 = vpop.f32.mrb[0].mxu0
  %238 = vmatprep.mubr.f32.mxu0 0.0
  %239 = vmatmul.mubr.f32.gmra.mrb[0].mxu0 %v145
  %v240 = vpop.f32.mrb[0].mxu0
  %v241 = vadd.f32 0.0, %v240
  %v242 = vpop.f32.mrb[0].mxu0
  %243 = vmatprep.mubr.f32.mxu0 0.0
  %244 = vmatmul.mubr.f32.gmra.mrb[0].mxu0 %v148
  %v245 = vpop.f32.mrb[0].mxu0
  %v246 = vadd.f32 0.0, %v245
  %v247 = vpop.f32.mrb[0].mxu0
  %248 = vmatprep.mubr.f32.mxu0 0.0
  %249 = vmatmul.mubr.f32.gmra.mrb[0].mxu0 %v151
  %v250 = vpop.f32.mrb[0].mxu0
  %v251 = vadd.f32 0.0, %v250
  %v252 = vpop.f32.mrb[0].mxu0
  %253 = vmatprep.mubr.f32.mxu0 0.0
  %254 = vmatmul.mubr.f32.gmra.mrb[0].mxu0 %v154
  %v255 = vpop.f32.mrb[0].mxu0
  %v256 = vadd.f32 0.0, %v255
  %v257 = vpop.f32.mrb[0].mxu0
  %258 = vmatprep.mubr.f32.mxu0 0.0
  %259 = vmatmul.mubr.f32.gmra.mrb[0].mxu0 %v157
  %v260 = vpop.f32.mrb[0].mxu0
  %v261 = vadd.f32 0.0, %v260
  %v262 = vpop.f32.mrb[0].mxu0
  %263 = vmatprep.mubr.f32.mxu0 0.0
  %264 = vmatmul.mubr.f32.gmra.mrb[0].mxu0 %v160
  %v265 = vpop.f32.mrb[0].mxu0
  %v266 = vadd.f32 0.0, %v265
  %v267 = vpop.f32.mrb[0].mxu0
  %268 = vmatprep.mubr.f32.mxu0 0.0
  %269 = vmatmul.mubr.f32.gmra.mrb[0].mxu0 %v163
  %v270 = vpop.f32.mrb[0].mxu0
  %v271 = vadd.f32 0.0, %v270
  %v272 = vpop.f32.mrb[0].mxu0
  %273 = vdwg.mxu0
  %v274 = vxor.u32 %v236, 2147483648
  %v275 = vxor.u32 %v241, 2147483648
  %v276 = vxor.u32 %v246, 2147483648
  %v277 = vxor.u32 %v251, 2147483648
  %v278 = vxor.u32 %v256, 2147483648
  %v279 = vxor.u32 %v261, 2147483648
  %v280 = vxor.u32 %v266, 2147483648
  %v281 = vxor.u32 %v271, 2147483648
  %v282 = vmul.f32 %v274, 1.442695
  %v283 = vpow.pop %v282
  %v284 = vmul.f32 %v275, 1.442695
  %v285 = vpow.pop %v284
  %v286 = vmul.f32 %v276, 1.442695
  %v287 = vpow.pop %v286
  %v288 = vmul.f32 %v277, 1.442695
  %v289 = vpow.pop %v288
  %v290 = vmul.f32 %v278, 1.442695
  %v291 = vpow.pop %v290
  %v292 = vmul.f32 %v279, 1.442695
  %v293 = vpow.pop %v292
  %v294 = vmul.f32 %v280, 1.442695
  %v295 = vpow.pop %v294
  %v296 = vmul.f32 %v281, 1.442695
  %v297 = vpow.pop %v296
  %v298 = vadd.f32 %v283, 1.0
  %v299 = vadd.f32 %v285, 1.0
  %v300 = vadd.f32 %v287, 1.0
  %v301 = vadd.f32 %v289, 1.0
  %v302 = vadd.f32 %v291, 1.0
  %v303 = vadd.f32 %v293, 1.0
  %v304 = vadd.f32 %v295, 1.0
  %v305 = vadd.f32 %v297, 1.0
  %v306 = vrcp.pop %v298
  %v307 = vmul.f32 1.0, %v306
  %v308 = vrcp.pop %v299
  %v309 = vmul.f32 1.0, %v308
  %v310 = vrcp.pop %v300
  %v311 = vmul.f32 1.0, %v310
  %v312 = vrcp.pop %v301
  %v313 = vmul.f32 1.0, %v312
  %v314 = vrcp.pop %v302
  %v315 = vmul.f32 1.0, %v314
  %v316 = vrcp.pop %v303
  %v317 = vmul.f32 1.0, %v316
  %v318 = vrcp.pop %v304
  %v319 = vmul.f32 1.0, %v318
  %v320 = vrcp.pop %v305
  %v321 = vmul.f32 1.0, %v320
  %323 = vset.pattern.permute.xlu0 0
  %324 = vperm.xlu0 %323, %v307
  %v325 = vpop.permute.xlu0 %324
  %328 = vset.pattern.permute.xlu0 0
  %329 = vperm.xlu0 %328, %v309
  %v330 = vpop.permute.xlu0 %329
  %333 = vset.pattern.permute.xlu0 0
  %334 = vperm.xlu0 %333, %v311
  %v335 = vpop.permute.xlu0 %334
  %338 = vset.pattern.permute.xlu0 0
  %339 = vperm.xlu0 %338, %v313
  %v340 = vpop.permute.xlu0 %339
  %343 = vset.pattern.permute.xlu0 0
  %344 = vperm.xlu0 %343, %v315
  %v345 = vpop.permute.xlu0 %344
  %348 = vset.pattern.permute.xlu0 0
  %349 = vperm.xlu0 %348, %v317
  %v350 = vpop.permute.xlu0 %349
  %353 = vset.pattern.permute.xlu0 0
  %354 = vperm.xlu0 %353, %v319
  %v355 = vpop.permute.xlu0 %354
  %358 = vset.pattern.permute.xlu0 0
  %359 = vperm.xlu0 %358, %v321
  %v360 = vpop.permute.xlu0 %359
  %v362 = vmul.f32 %v23, %v325
  %v363 = vmul.f32 %v24, %v330
  %v364 = vmul.f32 %v25, %v335
  %v365 = vmul.f32 %v26, %v340
  %v366 = vmul.f32 %v27, %v345
  %v367 = vmul.f32 %v28, %v350
  %v368 = vmul.f32 %v29, %v355
  %v369 = vmul.f32 %v30, %v360
  %370 = vst.msk [vmem:[%s3] sm:$0xff] %vm31, %v362
  %371 = vst.msk [vmem:[%s3 + $0x8] sm:$0xff] %vm31, %v363
  %372 = vst.msk [vmem:[%s3 + $0x10] sm:$0xff] %vm31, %v364
  %373 = vst.msk [vmem:[%s3 + $0x18] sm:$0xff] %vm31, %v365
  %374 = vst.msk [vmem:[%s3 + $0x20] sm:$0xff] %vm31, %v366
  %375 = vst.msk [vmem:[%s3 + $0x28] sm:$0xff] %vm31, %v367
  %376 = vst.msk [vmem:[%s3 + $0x30] sm:$0xff] %vm31, %v368
  %377 = vst.msk [vmem:[%s3 + $0x38] sm:$0xff] %vm31, %v369
  %s378 = scalar_lea.vmem %s0, 64
  %v379 = vld [vmem:[%s378] sm:$0xff]
  %v380 = vld [vmem:[%s378 + $0x8] sm:$0xff]
  %v381 = vld [vmem:[%s378 + $0x10] sm:$0xff]
  %v382 = vld [vmem:[%s378 + $0x18] sm:$0xff]
  %v383 = vld [vmem:[%s378 + $0x20] sm:$0xff]
  %v384 = vld [vmem:[%s378 + $0x28] sm:$0xff]
  %v385 = vld [vmem:[%s378 + $0x30] sm:$0xff]
  %v386 = vld [vmem:[%s378 + $0x38] sm:$0xff]
  %v387 = vsel %vm31, %v379, 0.0
  %388 = vadd.xlane.f32.xlu0 %v387
  %v389 = vpop.xlane.xlu0 %388
  %v390 = vsel %vm31, %v380, 0.0
  %391 = vadd.xlane.f32.xlu0 %v390
  %v392 = vpop.xlane.xlu0 %391
  %v393 = vsel %vm31, %v381, 0.0
  %394 = vadd.xlane.f32.xlu0 %v393
  %v395 = vpop.xlane.xlu0 %394
  %v396 = vsel %vm31, %v382, 0.0
  %397 = vadd.xlane.f32.xlu0 %v396
  %v398 = vpop.xlane.xlu0 %397
  %v399 = vsel %vm31, %v383, 0.0
  %400 = vadd.xlane.f32.xlu0 %v399
  %v401 = vpop.xlane.xlu0 %400
  %v402 = vsel %vm31, %v384, 0.0
  %403 = vadd.xlane.f32.xlu0 %v402
  %v404 = vpop.xlane.xlu0 %403
  %v405 = vsel %vm31, %v385, 0.0
  %406 = vadd.xlane.f32.xlu0 %v405
  %v407 = vpop.xlane.xlu0 %406
  %v408 = vsel %vm31, %v386, 0.0
  %409 = vadd.xlane.f32.xlu0 %v408
  %v410 = vpop.xlane.xlu0 %409
  %v411 = vmul.f32 %v389, %v56
  %v412 = vmul.f32 %v392, %v56
  %v413 = vmul.f32 %v395, %v56
  %v414 = vmul.f32 %v398, %v56
  %v415 = vmul.f32 %v401, %v56
  %v416 = vmul.f32 %v404, %v56
  %v417 = vmul.f32 %v407, %v56
  %v418 = vmul.f32 %v410, %v56
  %419 = vmatprep.subr.mxu0 0.0
  %420 = vmatpush1.msra.mxu0 %v411
  %421 = vmatprep.subr.mxu0 0.0
  %422 = vmatpush1.msra.mxu0 %v412
  %423 = vmatprep.subr.mxu0 0.0
  %424 = vmatpush1.msra.mxu0 %v413
  %425 = vmatprep.subr.mxu0 0.0
  %426 = vmatpush1.msra.mxu0 %v414
  %427 = vmatprep.subr.mxu0 0.0
  %428 = vmatpush1.msra.mxu0 %v415
  %429 = vmatprep.subr.mxu0 0.0
  %430 = vmatpush1.msra.mxu0 %v416
  %431 = vmatprep.subr.mxu0 0.0
  %432 = vmatpush1.msra.mxu0 %v417
  %433 = vmatprep.subr.mxu0 0.0
  %434 = vmatpush1.msra.mxu0 %v418
  %435 = vmatprep.subr.mxu0 0.0
  %436 = vmatpush1.msra.mxu0 0.0
  %437 = vmatprep.subr.mxu0 0.0
  %438 = vmatpush1.msra.mxu0 0.0
  %439 = vmatprep.subr.mxu0 0.0
  %440 = vmatpush1.msra.mxu0 0.0
  %441 = vmatprep.subr.mxu0 0.0
  %442 = vmatpush1.msra.mxu0 0.0
  %443 = vmatprep.subr.mxu0 0.0
  %444 = vmatpush1.msra.mxu0 0.0
  %445 = vmatprep.subr.mxu0 0.0
  %446 = vmatpush1.msra.mxu0 0.0
  %447 = vmatprep.subr.mxu0 0.0
  %448 = vmatpush1.msra.mxu0 0.0
  %449 = vmatprep.subr.mxu0 0.0
  %450 = vmatpush1.msra.mxu0 0.0
  %451 = vmatprep.subr.mxu0 0.0
  %452 = vmatpush1.msra.mxu0 0.0
  %453 = vmatprep.subr.mxu0 0.0
  %454 = vmatpush1.msra.mxu0 0.0
  %455 = vmatprep.subr.mxu0 0.0
  %456 = vmatpush1.msra.mxu0 0.0
  %457 = vmatprep.subr.mxu0 0.0
  %458 = vmatpush1.msra.mxu0 0.0
  %459 = vmatprep.subr.mxu0 0.0
  %460 = vmatpush1.msra.mxu0 0.0
  %461 = vmatprep.subr.mxu0 0.0
  %462 = vmatpush1.msra.mxu0 0.0
  %463 = vmatprep.subr.mxu0 0.0
  %464 = vmatpush1.msra.mxu0 0.0
  %465 = vmatprep.subr.mxu0 0.0
  %466 = vmatpush1.msra.mxu0 0.0
  %467 = vmatprep.subr.mxu0 0.0
  %468 = vmatpush1.msra.mxu0 0.0
  %469 = vmatprep.subr.mxu0 0.0
  %470 = vmatpush1.msra.mxu0 0.0
  %471 = vmatprep.subr.mxu0 0.0
  %472 = vmatpush1.msra.mxu0 0.0
  %473 = vmatprep.subr.mxu0 0.0
  %474 = vmatpush1.msra.mxu0 0.0
  %475 = vmatprep.subr.mxu0 0.0
  %476 = vmatpush1.msra.mxu0 0.0
  %477 = vmatprep.subr.mxu0 0.0
  %478 = vmatpush1.msra.mxu0 0.0
  %479 = vmatprep.subr.mxu0 0.0
  %480 = vmatpush1.msra.mxu0 0.0
  %481 = vmatprep.subr.mxu0 0.0
  %482 = vmatpush1.msra.mxu0 0.0
  %483 = vmatprep.mubr.f32.mxu0 0.0
  %484 = vmatmul.mubr.f32.gmra.mrb[0].mxu0 %v67
  %v485 = vpop.f32.mrb[0].mxu0
  %v486 = vadd.f32 0.0, %v485
  %v487 = vpop.f32.mrb[0].mxu0
  %488 = vdwg.mxu0
  %v489 = vmax.f32 %v486, 0.0
  %v491 = vsel %vm165, %v489, 0
  %493 = vmatprep.subr.mxu0 0.0
  %494 = vmatpush1.msra.mxu0 %v491
  %495 = vmatprep.subr.mxu0 0.0
  %496 = vmatpush1.msra.mxu0 0.0
  %497 = vmatprep.subr.mxu0 0.0
  %498 = vmatpush1.msra.mxu0 0.0
  %499 = vmatprep.subr.mxu0 0.0
  %500 = vmatpush1.msra.mxu0 0.0
  %501 = vmatprep.subr.mxu0 0.0
  %502 = vmatpush1.msra.mxu0 0.0
  %503 = vmatprep.subr.mxu0 0.0
  %504 = vmatpush1.msra.mxu0 0.0
  %505 = vmatprep.subr.mxu0 0.0
  %506 = vmatpush1.msra.mxu0 0.0
  %507 = vmatprep.subr.mxu0 0.0
  %508 = vmatpush1.msra.mxu0 0.0
  %509 = vmatprep.subr.mxu0 0.0
  %510 = vmatpush1.msra.mxu0 0.0
  %511 = vmatprep.subr.mxu0 0.0
  %512 = vmatpush1.msra.mxu0 0.0
  %513 = vmatprep.subr.mxu0 0.0
  %514 = vmatpush1.msra.mxu0 0.0
  %515 = vmatprep.subr.mxu0 0.0
  %516 = vmatpush1.msra.mxu0 0.0
  %517 = vmatprep.subr.mxu0 0.0
  %518 = vmatpush1.msra.mxu0 0.0
  %519 = vmatprep.subr.mxu0 0.0
  %520 = vmatpush1.msra.mxu0 0.0
  %521 = vmatprep.subr.mxu0 0.0
  %522 = vmatpush1.msra.mxu0 0.0
  %523 = vmatprep.subr.mxu0 0.0
  %524 = vmatpush1.msra.mxu0 0.0
  %525 = vmatprep.subr.mxu0 0.0
  %526 = vmatpush1.msra.mxu0 0.0
  %527 = vmatprep.subr.mxu0 0.0
  %528 = vmatpush1.msra.mxu0 0.0
  %529 = vmatprep.subr.mxu0 0.0
  %530 = vmatpush1.msra.mxu0 0.0
  %531 = vmatprep.subr.mxu0 0.0
  %532 = vmatpush1.msra.mxu0 0.0
  %533 = vmatprep.subr.mxu0 0.0
  %534 = vmatpush1.msra.mxu0 0.0
  %535 = vmatprep.subr.mxu0 0.0
  %536 = vmatpush1.msra.mxu0 0.0
  %537 = vmatprep.subr.mxu0 0.0
  %538 = vmatpush1.msra.mxu0 0.0
  %539 = vmatprep.subr.mxu0 0.0
  %540 = vmatpush1.msra.mxu0 0.0
  %541 = vmatprep.subr.mxu0 0.0
  %542 = vmatpush1.msra.mxu0 0.0
  %543 = vmatprep.subr.mxu0 0.0
  %544 = vmatpush1.msra.mxu0 0.0
  %545 = vmatprep.subr.mxu0 0.0
  %546 = vmatpush1.msra.mxu0 0.0
  %547 = vmatprep.subr.mxu0 0.0
  %548 = vmatpush1.msra.mxu0 0.0
  %549 = vmatprep.subr.mxu0 0.0
  %550 = vmatpush1.msra.mxu0 0.0
  %551 = vmatprep.subr.mxu0 0.0
  %552 = vmatpush1.msra.mxu0 0.0
  %553 = vmatprep.subr.mxu0 0.0
  %554 = vmatpush1.msra.mxu0 0.0
  %555 = vmatprep.subr.mxu0 0.0
  %556 = vmatpush1.msra.mxu0 0.0
  %557 = vmatprep.mubr.f32.mxu0 0.0
  %558 = vmatmul.mubr.f32.gmra.mrb[0].mxu0 %v142
  %v559 = vpop.f32.mrb[0].mxu0
  %v560 = vadd.f32 0.0, %v559
  %v561 = vpop.f32.mrb[0].mxu0
  %562 = vmatprep.mubr.f32.mxu0 0.0
  %563 = vmatmul.mubr.f32.gmra.mrb[0].mxu0 %v145
  %v564 = vpop.f32.mrb[0].mxu0
  %v565 = vadd.f32 0.0, %v564
  %v566 = vpop.f32.mrb[0].mxu0
  %567 = vmatprep.mubr.f32.mxu0 0.0
  %568 = vmatmul.mubr.f32.gmra.mrb[0].mxu0 %v148
  %v569 = vpop.f32.mrb[0].mxu0
  %v570 = vadd.f32 0.0, %v569
  %v571 = vpop.f32.mrb[0].mxu0
  %572 = vmatprep.mubr.f32.mxu0 0.0
  %573 = vmatmul.mubr.f32.gmra.mrb[0].mxu0 %v151
  %v574 = vpop.f32.mrb[0].mxu0
  %v575 = vadd.f32 0.0, %v574
  %v576 = vpop.f32.mrb[0].mxu0
  %577 = vmatprep.mubr.f32.mxu0 0.0
  %578 = vmatmul.mubr.f32.gmra.mrb[0].mxu0 %v154
  %v579 = vpop.f32.mrb[0].mxu0
  %v580 = vadd.f32 0.0, %v579
  %v581 = vpop.f32.mrb[0].mxu0
  %582 = vmatprep.mubr.f32.mxu0 0.0
  %583 = vmatmul.mubr.f32.gmra.mrb[0].mxu0 %v157
  %v584 = vpop.f32.mrb[0].mxu0
  %v585 = vadd.f32 0.0, %v584
  %v586 = vpop.f32.mrb[0].mxu0
  %587 = vmatprep.mubr.f32.mxu0 0.0
  %588 = vmatmul.mubr.f32.gmra.mrb[0].mxu0 %v160
  %v589 = vpop.f32.mrb[0].mxu0
  %v590 = vadd.f32 0.0, %v589
  %v591 = vpop.f32.mrb[0].mxu0
  %592 = vmatprep.mubr.f32.mxu0 0.0
  %593 = vmatmul.mubr.f32.gmra.mrb[0].mxu0 %v163
  %v594 = vpop.f32.mrb[0].mxu0
  %v595 = vadd.f32 0.0, %v594
  %v596 = vpop.f32.mrb[0].mxu0
  %597 = vdwg.mxu0
  %v598 = vxor.u32 %v560, 2147483648
  %v599 = vxor.u32 %v565, 2147483648
  %v600 = vxor.u32 %v570, 2147483648
  %v601 = vxor.u32 %v575, 2147483648
  %v602 = vxor.u32 %v580, 2147483648
  %v603 = vxor.u32 %v585, 2147483648
  %v604 = vxor.u32 %v590, 2147483648
  %v605 = vxor.u32 %v595, 2147483648
  %v606 = vmul.f32 %v598, 1.442695
  %v607 = vpow.pop %v606
  %v608 = vmul.f32 %v599, 1.442695
  %v609 = vpow.pop %v608
  %v610 = vmul.f32 %v600, 1.442695
  %v611 = vpow.pop %v610
  %v612 = vmul.f32 %v601, 1.442695
  %v613 = vpow.pop %v612
  %v614 = vmul.f32 %v602, 1.442695
  %v615 = vpow.pop %v614
  %v616 = vmul.f32 %v603, 1.442695
  %v617 = vpow.pop %v616
  %v618 = vmul.f32 %v604, 1.442695
  %v619 = vpow.pop %v618
  %v620 = vmul.f32 %v605, 1.442695
  %v621 = vpow.pop %v620
  %v622 = vadd.f32 %v607, 1.0
  %v623 = vadd.f32 %v609, 1.0
  %v624 = vadd.f32 %v611, 1.0
  %v625 = vadd.f32 %v613, 1.0
  %v626 = vadd.f32 %v615, 1.0
  %v627 = vadd.f32 %v617, 1.0
  %v628 = vadd.f32 %v619, 1.0
  %v629 = vadd.f32 %v621, 1.0
  %v630 = vrcp.pop %v622
  %v631 = vmul.f32 1.0, %v630
  %v632 = vrcp.pop %v623
  %v633 = vmul.f32 1.0, %v632
  %v634 = vrcp.pop %v624
  %v635 = vmul.f32 1.0, %v634
  %v636 = vrcp.pop %v625
  %v637 = vmul.f32 1.0, %v636
  %v638 = vrcp.pop %v626
  %v639 = vmul.f32 1.0, %v638
  %v640 = vrcp.pop %v627
  %v641 = vmul.f32 1.0, %v640
  %v642 = vrcp.pop %v628
  %v643 = vmul.f32 1.0, %v642
  %v644 = vrcp.pop %v629
  %v645 = vmul.f32 1.0, %v644
  %647 = vset.pattern.permute.xlu0 0
  %648 = vperm.xlu0 %647, %v631
  %v649 = vpop.permute.xlu0 %648
  %652 = vset.pattern.permute.xlu0 0
  %653 = vperm.xlu0 %652, %v633
  %v654 = vpop.permute.xlu0 %653
  %657 = vset.pattern.permute.xlu0 0
  %658 = vperm.xlu0 %657, %v635
  %v659 = vpop.permute.xlu0 %658
  %662 = vset.pattern.permute.xlu0 0
  %663 = vperm.xlu0 %662, %v637
  %v664 = vpop.permute.xlu0 %663
  %667 = vset.pattern.permute.xlu0 0
  %668 = vperm.xlu0 %667, %v639
  %v669 = vpop.permute.xlu0 %668
  %672 = vset.pattern.permute.xlu0 0
  %673 = vperm.xlu0 %672, %v641
  %v674 = vpop.permute.xlu0 %673
  %677 = vset.pattern.permute.xlu0 0
  %678 = vperm.xlu0 %677, %v643
  %v679 = vpop.permute.xlu0 %678
  %682 = vset.pattern.permute.xlu0 0
  %683 = vperm.xlu0 %682, %v645
  %v684 = vpop.permute.xlu0 %683
  %v686 = vmul.f32 %v379, %v649
  %v687 = vmul.f32 %v380, %v654
  %v688 = vmul.f32 %v381, %v659
  %v689 = vmul.f32 %v382, %v664
  %v690 = vmul.f32 %v383, %v669
  %v691 = vmul.f32 %v384, %v674
  %v692 = vmul.f32 %v385, %v679
  %v693 = vmul.f32 %v386, %v684
  %s694 = scalar_lea.vmem %s3, 64
  %695 = vst.msk [vmem:[%s694] sm:$0xff] %vm31, %v686
  %696 = vst.msk [vmem:[%s694 + $0x8] sm:$0xff] %vm31, %v687
  %697 = vst.msk [vmem:[%s694 + $0x10] sm:$0xff] %vm31, %v688
  %698 = vst.msk [vmem:[%s694 + $0x18] sm:$0xff] %vm31, %v689
  %699 = vst.msk [vmem:[%s694 + $0x20] sm:$0xff] %vm31, %v690
  %700 = vst.msk [vmem:[%s694 + $0x28] sm:$0xff] %vm31, %v691
  %701 = vst.msk [vmem:[%s694 + $0x30] sm:$0xff] %vm31, %v692
  %702 = vst.msk [vmem:[%s694 + $0x38] sm:$0xff] %vm31, %v693
  // Predicated region
  $region14: #{tpu_custom_call.1} parent=0 // pred_check
    _
  $region15: #{tpu_custom_call.1} parent=0 // pred_check_branch
    %704 = sbr.rel (0) target = $region17
  $region16: #{tpu_custom_call.1} parent=0 // pred_region
    _
  $region17: #{tpu_custom_call.1} parent=0 // pred_fallthru
    _
  // Predicated region
  $region18: #{tpu_custom_call.1} parent=0 // pred_check
    _
  $region19: #{tpu_custom_call.1} parent=0 // pred_check_branch
    %706 = sbr.rel (0) target = $region21
  $region20: #{tpu_custom_call.1} parent=0 // pred_region
    _
  $region21: #{tpu_custom_call.1} parent=0 // pred_fallthru
    _

</llo_original>
